<compile_context>
chip_gen: v5e
topology: v5e:2x2
jax: 0.10.0
libtpu: 0.0.40
codegen_flags: <defaults>
</compile_context>

<pallas_src>
import functools

import jax
import jax.numpy as jnp
from jax.experimental import pallas as pl
from jax.experimental.pallas import tpu as pltpu


# ----------------------------------------------------------------------------
# Kernels
# ----------------------------------------------------------------------------
def _zero_output_kernel_single(x_ref, w_cur_ref, w_init_ref,
                               b_cur_ref, b_init_ref, o_ref):
    """Full-K tile: one matmul on the weight diff, output written once."""
    dw = w_cur_ref[...] - w_init_ref[...]          # VPU sub, hidden under MXU
    db = b_cur_ref[...] - b_init_ref[...]          # (1, tn)
    o_ref[...] = (jnp.dot(x_ref[...], dw, preferred_element_type=jnp.float32)
                  + db).astype(o_ref.dtype)


def _zero_output_kernel_reduce_f32(x_ref, w_cur_ref, w_init_ref,
                                   b_cur_ref, b_init_ref, o_ref):
    """K tiled, f32 output: accumulate directly into o_ref (no scratch)."""
    k = pl.program_id(2)

    @pl.when(k == 0)
    def _():
        # Initialize with the bias diff so no epilogue pass is needed.
        o_ref[...] = jnp.broadcast_to(b_cur_ref[...] - b_init_ref[...],
                                      o_ref.shape)

    dw = w_cur_ref[...] - w_init_ref[...]
    o_ref[...] += jnp.dot(x_ref[...], dw, preferred_element_type=jnp.float32)


def _zero_output_kernel_reduce_acc(x_ref, w_cur_ref, w_init_ref,
                                   b_cur_ref, b_init_ref, o_ref, acc_ref):
    """K tiled, non-f32 output: f32 scratch accumulator + epilogue cast."""
    k = pl.program_id(2)

    @pl.when(k == 0)
    def _():
        acc_ref[...] = jnp.zeros_like(acc_ref)

    dw = w_cur_ref[...] - w_init_ref[...]
    acc_ref[...] += jnp.dot(x_ref[...], dw, preferred_element_type=jnp.float32)

    @pl.when(k == pl.num_programs(2) - 1)
    def _():
        db = b_cur_ref[...] - b_init_ref[...]
        o_ref[...] = (acc_ref[...] + db).astype(o_ref.dtype)


# ----------------------------------------------------------------------------
# Tile selection helpers
# ----------------------------------------------------------------------------
def _largest_aligned_divisor(dim, cap, align):
    """Largest valid Pallas tile t <= cap for extent `dim`:
    either t == dim (full dim) or (t % align == 0 and dim % t == 0)."""
    if dim <= cap:
        return dim
    t = (cap // align) * align
    while t >= align:
        if dim % t == 0:
            return t
        t -= align
    return dim  # no smaller valid tile exists; fall back to the full dim


def _num_tensorcores():
    try:
        kind = jax.devices()[0].device_kind.lower()
    except Exception:  # pragma: no cover - CPU/interpret fallbacks
        return 1
    return 2 if "v7" in kind else 1


def _choose_tiles(B, D_in, D_out, in_itemsize, out_itemsize, needs_scratch):
    MAX_TILE = 512          # ~85% of HBM roofline per tile-size sweeps
    FULL_K_MAX = 1024       # collapse the reduction axis when D_in fits
    VMEM_BUDGET = 14 << 20  # stay under v5e's 16 MiB default scoped VMEM

    tm = _largest_aligned_divisor(B, MAX_TILE, 8)        # collapse batch if possible
    tn = _largest_aligned_divisor(D_out, MAX_TILE, 128)
    tk = D_in if D_in <= FULL_K_MAX else _largest_aligned_divisor(D_in, MAX_TILE, 128)

    # v7x has 2 TensorCores: make sure the parallel (i, j) axes expose >= 2 blocks.
    if _num_tensorcores() > 1 and (B // tm) * (D_out // tn) < 2:
        tn_half = _largest_aligned_divisor(D_out, max(tn // 2, 128), 128)
        if tn_half < tn:
            tn = tn_half

    def footprint(tm_, tn_, tk_):
        return (2 * tm_ * tk_ * in_itemsize          # x, double-buffered
                + 4 * tk_ * tn_ * in_itemsize        # 2 weights x 2 buffers
                + 4 * tn_ * in_itemsize              # 2 biases x 2 buffers
                + 2 * tm_ * tn_ * out_itemsize       # output, double-buffered
                + (tm_ * tn_ * 4 if needs_scratch else 0))

    # Shrink (k first, then n, then m) until the double-buffered footprint fits.
    while footprint(tm, tn, tk) > VMEM_BUDGET:
        new_tk = _largest_aligned_divisor(D_in, max(tk // 2, 128), 128) if tk > 128 else tk
        if new_tk < tk:
            tk = new_tk
            continue
        new_tn = _largest_aligned_divisor(D_out, max(tn // 2, 128), 128) if tn > 128 else tn
        if new_tn < tn:
            tn = new_tn
            continue
        new_tm = _largest_aligned_divisor(B, max(tm // 2, 8), 8) if tm > 8 else tm
        if new_tm < tm:
            tm = new_tm
            continue
        break  # cannot shrink further with valid tiles
    return tm, tn, tk


# ----------------------------------------------------------------------------
# Wrapper
# ----------------------------------------------------------------------------
@functools.partial(jax.jit, static_argnames=("tm", "tn", "tk"))
def zero_output(x, w_cur, b_cur, w_init, b_init, *, tm=None, tn=None, tk=None):
    """ZeroOutput forward for a Linear inner model.

    x: (B, D_in); w_*: (D_in, D_out) pre-transposed; b_*: (D_out,) or (1, D_out).
    Returns model(x) - init_model(x) = x @ (W_cur - W_init) + (b_cur - b_init).
    """
    B, D_in = x.shape
    D_out = w_cur.shape[1]
    b_cur = b_cur.reshape(1, D_out)
    b_init = b_init.reshape(1, D_out)

    out_dtype = x.dtype
    f32_out = out_dtype == jnp.float32

    in_bytes = jnp.dtype(x.dtype).itemsize
    out_bytes = jnp.dtype(out_dtype).itemsize
    atm, atn, atk = _choose_tiles(B, D_in, D_out, in_bytes, out_bytes,
                                  needs_scratch=not f32_out)
    tm = atm if tm is None else tm
    tn = atn if tn is None else tn
    tk = atk if tk is None else tk

    assert B % tm == 0 and D_out % tn == 0 and D_in % tk == 0, \
        "dims must be divisible by the chosen tile sizes"

    # Advisory cost model (actual weight re-streams scale with B // tm).
    cost = pl.CostEstimate(
        flops=2 * B * D_in * D_out,
        transcendentals=0,
        bytes_accessed=int(
            in_bytes * (B * D_in * (D_out // tn)
                        + 2 * D_in * D_out * (B // tm)
                        + 2 * D_out)
            + out_bytes * B * D_out),
    )

    if tk == D_in:
        # Reduction axis collapsed: no scratch, no k-loop, single write of o_ref.
        grid = (B // tm, D_out // tn)
        return pl.pallas_call(
            _zero_output_kernel_single,
            out_shape=jax.ShapeDtypeStruct((B, D_out), out_dtype),
            grid_spec=pltpu.PrefetchScalarGridSpec(
                num_scalar_prefetch=0,
                grid=grid,
                in_specs=[
                    pl.BlockSpec((tm, tk), lambda i, j: (i, 0)),   # x
                    pl.BlockSpec((tk, tn), lambda i, j: (0, j)),   # W_cur
                    pl.BlockSpec((tk, tn), lambda i, j: (0, j)),   # W_init
                    pl.BlockSpec((1, tn), lambda i, j: (0, j)),    # b_cur
                    pl.BlockSpec((1, tn), lambda i, j: (0, j)),    # b_init
                ],
                out_specs=pl.BlockSpec((tm, tn), lambda i, j: (i, j)),
            ),
            compiler_params=pltpu.CompilerParams(
                dimension_semantics=("parallel", "parallel")),
            cost_estimate=cost,
        )(x, w_cur, w_init, b_cur, b_init)

    # K must be tiled: reduction axis last; f32 outputs accumulate into o_ref.
    grid = (B // tm, D_out // tn, D_in // tk)
    kernel = (_zero_output_kernel_reduce_f32 if f32_out
              else _zero_output_kernel_reduce_acc)
    scratch = [] if f32_out else [pltpu.VMEM((tm, tn), jnp.float32)]
    return pl.pallas_call(
        kernel,
        out_shape=jax.ShapeDtypeStruct((B, D_out), out_dtype),
        grid_spec=pltpu.PrefetchScalarGridSpec(
            num_scalar_prefetch=0,
            grid=grid,
            in_specs=[
                pl.BlockSpec((tm, tk), lambda i, j, k: (i, k)),   # x
                pl.BlockSpec((tk, tn), lambda i, j, k: (k, j)),   # W_cur
                pl.BlockSpec((tk, tn), lambda i, j, k: (k, j)),   # W_init
                pl.BlockSpec((1, tn), lambda i, j, k: (0, j)),    # b_cur
                pl.BlockSpec((1, tn), lambda i, j, k: (0, j)),    # b_init
            ],
            out_specs=pl.BlockSpec((tm, tn), lambda i, j, k: (i, j)),
            scratch_shapes=scratch,
        ),
        compiler_params=pltpu.CompilerParams(
            dimension_semantics=("parallel", "parallel", "arbitrary")),
        cost_estimate=cost,
    )(x, w_cur, w_init, b_cur, b_init)


if __name__ == "__main__":
    key = jax.random.PRNGKey(0)
    k_x, k_w, k_b, k_dw, k_db = jax.random.split(key, 5)

    # Small shapes consistent with a Linear inner model.
    B, D_in, D_out = 16, 256, 256

    x = jax.random.normal(k_x, (B, D_in), dtype=jnp.float32)

    # Frozen "init_model" parameters (the deepcopy taken at __init__).
    w_init = jax.random.normal(k_w, (D_in, D_out), dtype=jnp.float32) * 0.1
    b_init = jax.random.normal(k_b, (1, D_out), dtype=jnp.float32) * 0.1

    # "Current" model parameters: simulate training by adding a delta.
    w_cur = w_init + jax.random.normal(k_dw, (D_in, D_out), dtype=jnp.float32) * 0.05
    b_cur = b_init + jax.random.normal(k_db, (1, D_out), dtype=jnp.float32) * 0.05

    # Pure-JAX reference (original two-forward formulation).
    ref = (x @ w_cur + b_cur) - (x @ w_init + b_init)

    # Auto-tiled path: batch axis collapses (tm=B) and the reduction axis is
    # dropped (tk=D_in) -> single-matmul kernel with no scratch.
    out = jax.block_until_ready(zero_output(x, w_cur, b_cur, w_init, b_init))
    assert out.shape == (B, D_out)
    assert jnp.allclose(out, ref, atol=1e-4, rtol=1e-4)

    # Forced multi-step (i, j, k) grid to exercise the accumulate-into-o_ref
    # reduction kernel.
    out_k = jax.block_until_ready(
        zero_output(x, w_cur, b_cur, w_init, b_init, tm=8, tn=128, tk=128))
    assert jnp.allclose(out_k, ref, atol=1e-4, rtol=1e-4)

    # Right after __init__ both parameter sets are identical -> exact zeros
    # (the fused x @ (W_cur - W_init) form makes this bitwise exact).
    zero = jax.block_until_ready(
        zero_output(x, w_init, b_init, w_init, b_init))
    assert jnp.all(zero == 0.0)

    print("KERNEL_OK")
</pallas_src>

<mosaic_0001>
module attributes {stable_mosaic.version = 11 : i64} {
  func.func @_zero_output_kernel_single(%arg0: i32, %arg1: i32, %arg2: memref<16x256xf32, #tpu.memory_space<vmem>>, %arg3: memref<256x256xf32, #tpu.memory_space<vmem>>, %arg4: memref<256x256xf32, #tpu.memory_space<vmem>>, %arg5: memref<1x256xf32, #tpu.memory_space<vmem>>, %arg6: memref<1x256xf32, #tpu.memory_space<vmem>>, %arg7: memref<16x256xf32, #tpu.memory_space<vmem>>) attributes {dimension_semantics = [#tpu.dimension_semantics<parallel>, #tpu.dimension_semantics<parallel>], iteration_bounds = array<i64: 1, 1>, scalar_prefetch = 0 : i64, scratch_operands = 0 : i64, tpu.core_type = #tpu.core_type<tc>, window_params = [{transform_indices = @transform_0, window_bounds = array<i64: 16, 256>}, {transform_indices = @transform_1, window_bounds = array<i64: 256, 256>}, {transform_indices = @transform_2, window_bounds = array<i64: 256, 256>}, {transform_indices = @transform_3, window_bounds = array<i64: 1, 256>}, {transform_indices = @transform_4, window_bounds = array<i64: 1, 256>}, {transform_indices = @transform_5, window_bounds = array<i64: 16, 256>}]} {
    %c0 = arith.constant 0 : index
    %c0_0 = arith.constant 0 : index
    %0 = vector.load %arg3[%c0, %c0_0] : memref<256x256xf32, #tpu.memory_space<vmem>>, vector<256x256xf32>
    %c0_1 = arith.constant 0 : index
    %c0_2 = arith.constant 0 : index
    %1 = vector.load %arg4[%c0_1, %c0_2] : memref<256x256xf32, #tpu.memory_space<vmem>>, vector<256x256xf32>
    %2 = arith.subf %0, %1 : vector<256x256xf32>
    %c0_3 = arith.constant 0 : index
    %c0_4 = arith.constant 0 : index
    %3 = vector.load %arg5[%c0_3, %c0_4] : memref<1x256xf32, #tpu.memory_space<vmem>>, vector<1x256xf32>
    %c0_5 = arith.constant 0 : index
    %c0_6 = arith.constant 0 : index
    %4 = vector.load %arg6[%c0_5, %c0_6] : memref<1x256xf32, #tpu.memory_space<vmem>>, vector<1x256xf32>
    %5 = arith.subf %3, %4 : vector<1x256xf32>
    %c0_7 = arith.constant 0 : index
    %c0_8 = arith.constant 0 : index
    %6 = vector.load %arg2[%c0_7, %c0_8] : memref<16x256xf32, #tpu.memory_space<vmem>>, vector<16x256xf32>
    %cst = arith.constant dense<0.000000e+00> : vector<16x256xf32>
    %7 = tpu.matmul %6, %2, %cst {dimension_numbers = #tpu.dot_dimension_numbers<[1], [0], [0], [1], [0, 0, 1, 1], [], []>} : vector<16x256xf32>, vector<256x256xf32>, vector<16x256xf32> -> vector<16x256xf32>
    %8 = vector.broadcast %5 : vector<1x256xf32> to vector<16x256xf32>
    %9 = arith.addf %7, %8 : vector<16x256xf32>
    %c0_9 = arith.constant 0 : index
    %c0_10 = arith.constant 0 : index
    %10 = vector.load %arg7[%c0_9, %c0_10] : memref<16x256xf32, #tpu.memory_space<vmem>>, vector<16x256xf32>
    tpu.vector_store %arg7[%c0_9, %c0_10], %9 {strides = array<i32>} : memref<16x256xf32, #tpu.memory_space<vmem>>, vector<16x256xf32>,
    return
  }
  func.func @transform_0(%arg0: i32, %arg1: i32) -> (i32, i32) {
    %c0_i32 = arith.constant 0 : i32
    %c0_i32_0 = arith.constant 0 : i32
    return %arg0, %c0_i32 : i32, i32
  }
  func.func @transform_1(%arg0: i32, %arg1: i32) -> (i32, i32) {
    %c0_i32 = arith.constant 0 : i32
    %c0_i32_0 = arith.constant 0 : i32
    return %c0_i32, %arg1 : i32, i32
  }
  func.func @transform_2(%arg0: i32, %arg1: i32) -> (i32, i32) {
    %c0_i32 = arith.constant 0 : i32
    %c0_i32_0 = arith.constant 0 : i32
    return %c0_i32, %arg1 : i32, i32
  }
  func.func @transform_3(%arg0: i32, %arg1: i32) -> (i32, i32) {
    %c0_i32 = arith.constant 0 : i32
    %c0_i32_0 = arith.constant 0 : i32
    return %c0_i32, %arg1 : i32, i32
  }
  func.func @transform_4(%arg0: i32, %arg1: i32) -> (i32, i32) {
    %c0_i32 = arith.constant 0 : i32
    %c0_i32_0 = arith.constant 0 : i32
    return %c0_i32, %arg1 : i32, i32
  }
  func.func @transform_5(%arg0: i32, %arg1: i32) -> (i32, i32) {
    %c0_i32 = arith.constant 0 : i32
    return %arg0, %arg1 : i32, i32
  }
}

</mosaic_0001>

<llo_original>
// kernel: zero_output.1
$region0: #{zero_output.1}
  #allocation0 [shape = 'u32[]', space=smem, size = 0x4, offset = 0x4, fixed_abs, tag = 'smem constant byte address 0x4 - core index']
  #allocation1 [shape = 'u32[72,128]{1,0:T(1,128)}', space=vmem, size = 0x9000, scoped, tag = 'internal scratch']
  %s0 = inlined_call_operand.hbm [shape: f32[16,256], index: 0, kind: input, shape index: {}]
  %s1 = inlined_call_operand.hbm [shape: f32[256,256], index: 1, kind: input, shape index: {}]
  %s2 = inlined_call_operand.hbm [shape: f32[256,256], index: 2, kind: input, shape index: {}]
  %s3 = inlined_call_operand.hbm [shape: f32[1,256], index: 3, kind: input, shape index: {}]
  %s4 = inlined_call_operand.vmem [shape: f32[1,256], index: 4, kind: input, shape index: {}]
  %s5 = inlined_call_operand.hbm [shape: f32[16,256], index: 5, kind: output, shape index: {}]
  %s6 = sld [smem:[#allocation0]]
  $region46: #{zero_output.1} parent=0
    _
  %s8 = ssub.s32 1, %s6
  %s9 = scalar_select 0, %s8, %s6
  $region1: #{zero_output.1} parent=0
    #allocation2 [shape = 'u8[16384]{0}', space=vmem, size = 0x4000, scoped, tag = 'input window, operand 0, single buffered']
    #allocation3 [shape = 's32[1]{0}', space=sflag, size = 0x4, scoped, tag = 'scoped memory for zero_output.1']
    #allocation4 [shape = 's32[1]{0}', space=sflag, size = 0x4, scoped, tag = 'scoped memory for zero_output.1']
    #allocation5 [shape = 'u8[262144]{0}', space=vmem, size = 0x40000, scoped, tag = 'input window, operand 1, single buffered']
    #allocation6 [shape = 's32[1]{0}', space=sflag, size = 0x4, scoped, tag = 'scoped memory for zero_output.1']
    #allocation7 [shape = 'u8[262144]{0}', space=vmem, size = 0x40000, scoped, tag = 'input window, operand 2, single buffered']
    #allocation8 [shape = 'u8[1024]{0}', space=vmem, size = 0x400, scoped, tag = 'input window, operand 3, single buffered']
    #allocation9 [shape = 's32[1]{0}', space=sflag, size = 0x4, scoped, tag = 'scoped memory for zero_output.1']
    #allocation10 [shape = 'u8[16384]{0}', space=vmem, size = 0x4000, scoped, tag = 'output window, operand 0, single buffered']
    %10 = vsyncpa [#allocation3], 0
    %11 = vsyncpa [#allocation6], 0
    %12 = vsyncpa [#allocation9], 0
    %13 = vsyncpa [#allocation4], 0
    // Predicated region
    $region2: #{zero_output.1} parent=1 // pred_check
      _
    $region3: #{zero_output.1} parent=1 // pred_check_branch
      %15 = sbr.rel (0) target = $region5
    $region4: #{zero_output.1} parent=1 // pred_region
      %17 = vsyncadd [#allocation3], 0
      %s18 = sshll.u32 %s0, 4
      %s19 = int_to_ptr.hbm [resolvable:$true] %s18
      %s20 = sshll.u32 [#allocation2], 4
      %s21 = int_to_ptr.vmem [resolvable:$true] %s20
      %26 = dma.hbm_to_vmem [thread:$0]  %s19, 512, %s21, [#allocation3], 256, 256, 16
    $region5: #{zero_output.1} parent=1 // pred_fallthru
      _
    // Predicated region
    $region6: #{zero_output.1} parent=1 // pred_check
      _
    $region7: #{zero_output.1} parent=1 // pred_check_branch
      %28 = sbr.rel (0) target = $region9
    $region8: #{zero_output.1} parent=1 // pred_region
      %30 = vsyncadd [#allocation6], 0
      %s31 = sshll.u32 %s1, 4
      %s32 = int_to_ptr.hbm [resolvable:$true] %s31
      %s33 = sshll.u32 [#allocation5], 4
      %s34 = int_to_ptr.vmem [resolvable:$true] %s33
      %39 = dma.hbm_to_vmem [thread:$0]  %s32, 8192, %s34, [#allocation6], 256, 256, 16
    $region9: #{zero_output.1} parent=1 // pred_fallthru
      _
    // Predicated region
    $region10: #{zero_output.1} parent=1 // pred_check
      _
    $region11: #{zero_output.1} parent=1 // pred_check_branch
      %41 = sbr.rel (0) target = $region13
    $region12: #{zero_output.1} parent=1 // pred_region
      %43 = vsyncadd [#allocation6], 0
      %s44 = sshll.u32 %s2, 4
      %s45 = int_to_ptr.hbm [resolvable:$true] %s44
      %s46 = sshll.u32 [#allocation7], 4
      %s47 = int_to_ptr.vmem [resolvable:$true] %s46
      %52 = dma.hbm_to_vmem [thread:$0]  %s45, 8192, %s47, [#allocation6], 256, 256, 16
    $region13: #{zero_output.1} parent=1 // pred_fallthru
      _
    // Predicated region
    $region14: #{zero_output.1} parent=1 // pred_check
      _
    $region15: #{zero_output.1} parent=1 // pred_check_branch
      %54 = sbr.rel (0) target = $region17
    $region16: #{zero_output.1} parent=1 // pred_region
      %56 = vsyncadd [#allocation9], 0
      %s58 = sshll.u32 %s3, 4
      %s59 = int_to_ptr.hbm [resolvable:$true] %s58
      %s60 = sshll.u32 [#allocation8], 4
      %s61 = int_to_ptr.vmem [resolvable:$true] %s60
      %63 = dma.hbm_to_vmem [thread:$0]  %s59, 32, %s61, [#allocation9]
    $region17: #{zero_output.1} parent=1 // pred_fallthru
      _
    // Predicated region
    $region18: #{zero_output.1} parent=1 // pred_check
      _
    $region19: #{zero_output.1} parent=1 // pred_check_branch
      %65 = sbr.rel (0) target = $region21
    $region20: #{zero_output.1} parent=1 // pred_region
      _
    $region21: #{zero_output.1} parent=1 // pred_fallthru
      _
    // Predicated region
    $region22: #{zero_output.1} parent=1 // pred_check
      _
    $region23: #{zero_output.1} parent=1 // pred_check_branch
      %67 = sbr.rel (0) target = $region25
    $region24: #{zero_output.1} parent=1 // pred_region
      %69 = dma.done [#allocation3], 512
    $region25: #{zero_output.1} parent=1 // pred_fallthru
      _
    // Predicated region
    $region26: #{zero_output.1} parent=1 // pred_check
      _
    $region27: #{zero_output.1} parent=1 // pred_check_branch
      %71 = sbr.rel (0) target = $region29
    $region28: #{zero_output.1} parent=1 // pred_region
      %73 = dma.done [#allocation6], 8192
    $region29: #{zero_output.1} parent=1 // pred_fallthru
      _
    // Predicated region
    $region30: #{zero_output.1} parent=1 // pred_check
      _
    $region31: #{zero_output.1} parent=1 // pred_check_branch
      %75 = sbr.rel (0) target = $region33
    $region32: #{zero_output.1} parent=1 // pred_region
      %77 = dma.done [#allocation6], 8192
    $region33: #{zero_output.1} parent=1 // pred_fallthru
      _
    // Predicated region
    $region34: #{zero_output.1} parent=1 // pred_check
      _
    $region35: #{zero_output.1} parent=1 // pred_check_branch
      %79 = sbr.rel (0) target = $region37
    $region36: #{zero_output.1} parent=1 // pred_region
      %81 = dma.done [#allocation9], 32
    $region37: #{zero_output.1} parent=1 // pred_fallthru
      _
    %v82 = vld [vmem:[#allocation5] sm:$0xff]
    %v83 = vld [vmem:[#allocation5 + $0x8] sm:$0xff]
    %v84 = vld [vmem:[#allocation5 + $0x10] sm:$0xff]
    %v85 = vld [vmem:[#allocation5 + $0x18] sm:$0xff]
    %v86 = vld [vmem:[#allocation5 + $0x20] sm:$0xff]
    %v87 = vld [vmem:[#allocation5 + $0x28] sm:$0xff]
    %v88 = vld [vmem:[#allocation5 + $0x30] sm:$0xff]
    %v89 = vld [vmem:[#allocation5 + $0x38] sm:$0xff]
    %v90 = vld [vmem:[#allocation5 + $0x40] sm:$0xff]
    %v91 = vld [vmem:[#allocation5 + $0x48] sm:$0xff]
    %v92 = vld [vmem:[#allocation5 + $0x50] sm:$0xff]
    %v93 = vld [vmem:[#allocation5 + $0x58] sm:$0xff]
    %v94 = vld [vmem:[#allocation5 + $0x60] sm:$0xff]
    %v95 = vld [vmem:[#allocation5 + $0x68] sm:$0xff]
    %v96 = vld [vmem:[#allocation5 + $0x70] sm:$0xff]
    %v97 = vld [vmem:[#allocation5 + $0x78] sm:$0xff]
    %v98 = vld [vmem:[#allocation5 + $0x80] sm:$0xff]
    %v99 = vld [vmem:[#allocation5 + $0x88] sm:$0xff]
    %v100 = vld [vmem:[#allocation5 + $0x90] sm:$0xff]
    %v101 = vld [vmem:[#allocation5 + $0x98] sm:$0xff]
    %v102 = vld [vmem:[#allocation5 + $0xa0] sm:$0xff]
    %v103 = vld [vmem:[#allocation5 + $0xa8] sm:$0xff]
    %v104 = vld [vmem:[#allocation5 + $0xb0] sm:$0xff]
    %v105 = vld [vmem:[#allocation5 + $0xb8] sm:$0xff]
    %v106 = vld [vmem:[#allocation5 + $0xc0] sm:$0xff]
    %v107 = vld [vmem:[#allocation5 + $0xc8] sm:$0xff]
    %v108 = vld [vmem:[#allocation5 + $0xd0] sm:$0xff]
    %v109 = vld [vmem:[#allocation5 + $0xd8] sm:$0xff]
    %v110 = vld [vmem:[#allocation5 + $0xe0] sm:$0xff]
    %v111 = vld [vmem:[#allocation5 + $0xe8] sm:$0xff]
    %v112 = vld [vmem:[#allocation5 + $0xf0] sm:$0xff]
    %v113 = vld [vmem:[#allocation5 + $0xf8] sm:$0xff]
    %v114 = vld [vmem:[#allocation5 + $0x100] sm:$0xff]
    %v115 = vld [vmem:[#allocation5 + $0x108] sm:$0xff]
    %v116 = vld [vmem:[#allocation5 + $0x110] sm:$0xff]
    %v117 = vld [vmem:[#allocation5 + $0x118] sm:$0xff]
    %v118 = vld [vmem:[#allocation5 + $0x120] sm:$0xff]
    %v119 = vld [vmem:[#allocation5 + $0x128] sm:$0xff]
    %v120 = vld [vmem:[#allocation5 + $0x130] sm:$0xff]
    %v121 = vld [vmem:[#allocation5 + $0x138] sm:$0xff]
    %v122 = vld [vmem:[#allocation5 + $0x140] sm:$0xff]
    %v123 = vld [vmem:[#allocation5 + $0x148] sm:$0xff]
    %v124 = vld [vmem:[#allocation5 + $0x150] sm:$0xff]
    %v125 = vld [vmem:[#allocation5 + $0x158] sm:$0xff]
    %v126 = vld [vmem:[#allocation5 + $0x160] sm:$0xff]
    %v127 = vld [vmem:[#allocation5 + $0x168] sm:$0xff]
    %v128 = vld [vmem:[#allocation5 + $0x170] sm:$0xff]
    %v129 = vld [vmem:[#allocation5 + $0x178] sm:$0xff]
    %v130 = vld [vmem:[#allocation5 + $0x180] sm:$0xff]
    %v131 = vld [vmem:[#allocation5 + $0x188] sm:$0xff]
    %v132 = vld [vmem:[#allocation5 + $0x190] sm:$0xff]
    %v133 = vld [vmem:[#allocation5 + $0x198] sm:$0xff]
    %v134 = vld [vmem:[#allocation5 + $0x1a0] sm:$0xff]
    %v135 = vld [vmem:[#allocation5 + $0x1a8] sm:$0xff]
    %v136 = vld [vmem:[#allocation5 + $0x1b0] sm:$0xff]
    %v137 = vld [vmem:[#allocation5 + $0x1b8] sm:$0xff]
    %v138 = vld [vmem:[#allocation5 + $0x1c0] sm:$0xff]
    %v139 = vld [vmem:[#allocation5 + $0x1c8] sm:$0xff]
    %v140 = vld [vmem:[#allocation5 + $0x1d0] sm:$0xff]
    %v141 = vld [vmem:[#allocation5 + $0x1d8] sm:$0xff]
    %v142 = vld [vmem:[#allocation5 + $0x1e0] sm:$0xff]
    %v143 = vld [vmem:[#allocation5 + $0x1e8] sm:$0xff]
    %v144 = vld [vmem:[#allocation5 + $0x1f0] sm:$0xff]
    %v145 = vld [vmem:[#allocation5 + $0x1f8] sm:$0xff]
    %v146 = vld [vmem:[#allocation7] sm:$0xff]
    %v147 = vld [vmem:[#allocation7 + $0x8] sm:$0xff]
    %v148 = vld [vmem:[#allocation7 + $0x10] sm:$0xff]
    %v149 = vld [vmem:[#allocation7 + $0x18] sm:$0xff]
    %v150 = vld [vmem:[#allocation7 + $0x20] sm:$0xff]
    %v151 = vld [vmem:[#allocation7 + $0x28] sm:$0xff]
    %v152 = vld [vmem:[#allocation7 + $0x30] sm:$0xff]
    %v153 = vld [vmem:[#allocation7 + $0x38] sm:$0xff]
    %v154 = vld [vmem:[#allocation7 + $0x40] sm:$0xff]
    %v155 = vld [vmem:[#allocation7 + $0x48] sm:$0xff]
    %v156 = vld [vmem:[#allocation7 + $0x50] sm:$0xff]
    %v157 = vld [vmem:[#allocation7 + $0x58] sm:$0xff]
    %v158 = vld [vmem:[#allocation7 + $0x60] sm:$0xff]
    %v159 = vld [vmem:[#allocation7 + $0x68] sm:$0xff]
    %v160 = vld [vmem:[#allocation7 + $0x70] sm:$0xff]
    %v161 = vld [vmem:[#allocation7 + $0x78] sm:$0xff]
    %v162 = vld [vmem:[#allocation7 + $0x80] sm:$0xff]
    %v163 = vld [vmem:[#allocation7 + $0x88] sm:$0xff]
    %v164 = vld [vmem:[#allocation7 + $0x90] sm:$0xff]
    %v165 = vld [vmem:[#allocation7 + $0x98] sm:$0xff]
    %v166 = vld [vmem:[#allocation7 + $0xa0] sm:$0xff]
    %v167 = vld [vmem:[#allocation7 + $0xa8] sm:$0xff]
    %v168 = vld [vmem:[#allocation7 + $0xb0] sm:$0xff]
    %v169 = vld [vmem:[#allocation7 + $0xb8] sm:$0xff]
    %v170 = vld [vmem:[#allocation7 + $0xc0] sm:$0xff]
    %v171 = vld [vmem:[#allocation7 + $0xc8] sm:$0xff]
    %v172 = vld [vmem:[#allocation7 + $0xd0] sm:$0xff]
    %v173 = vld [vmem:[#allocation7 + $0xd8] sm:$0xff]
    %v174 = vld [vmem:[#allocation7 + $0xe0] sm:$0xff]
    %v175 = vld [vmem:[#allocation7 + $0xe8] sm:$0xff]
    %v176 = vld [vmem:[#allocation7 + $0xf0] sm:$0xff]
    %v177 = vld [vmem:[#allocation7 + $0xf8] sm:$0xff]
    %v178 = vld [vmem:[#allocation7 + $0x100] sm:$0xff]
    %v179 = vld [vmem:[#allocation7 + $0x108] sm:$0xff]
    %v180 = vld [vmem:[#allocation7 + $0x110] sm:$0xff]
    %v181 = vld [vmem:[#allocation7 + $0x118] sm:$0xff]
    %v182 = vld [vmem:[#allocation7 + $0x120] sm:$0xff]
    %v183 = vld [vmem:[#allocation7 + $0x128] sm:$0xff]
    %v184 = vld [vmem:[#allocation7 + $0x130] sm:$0xff]
    %v185 = vld [vmem:[#allocation7 + $0x138] sm:$0xff]
    %v186 = vld [vmem:[#allocation7 + $0x140] sm:$0xff]
    %v187 = vld [vmem:[#allocation7 + $0x148] sm:$0xff]
    %v188 = vld [vmem:[#allocation7 + $0x150] sm:$0xff]
    %v189 = vld [vmem:[#allocation7 + $0x158] sm:$0xff]
    %v190 = vld [vmem:[#allocation7 + $0x160] sm:$0xff]
    %v191 = vld [vmem:[#allocation7 + $0x168] sm:$0xff]
    %v192 = vld [vmem:[#allocation7 + $0x170] sm:$0xff]
    %v193 = vld [vmem:[#allocation7 + $0x178] sm:$0xff]
    %v194 = vld [vmem:[#allocation7 + $0x180] sm:$0xff]
    %v195 = vld [vmem:[#allocation7 + $0x188] sm:$0xff]
    %v196 = vld [vmem:[#allocation7 + $0x190] sm:$0xff]
    %v197 = vld [vmem:[#allocation7 + $0x198] sm:$0xff]
    %v198 = vld [vmem:[#allocation7 + $0x1a0] sm:$0xff]
    %v199 = vld [vmem:[#allocation7 + $0x1a8] sm:$0xff]
    %v200 = vld [vmem:[#allocation7 + $0x1b0] sm:$0xff]
    %v201 = vld [vmem:[#allocation7 + $0x1b8] sm:$0xff]
    %v202 = vld [vmem:[#allocation7 + $0x1c0] sm:$0xff]
    %v203 = vld [vmem:[#allocation7 + $0x1c8] sm:$0xff]
    %v204 = vld [vmem:[#allocation7 + $0x1d0] sm:$0xff]
    %v205 = vld [vmem:[#allocation7 + $0x1d8] sm:$0xff]
    %v206 = vld [vmem:[#allocation7 + $0x1e0] sm:$0xff]
    %v207 = vld [vmem:[#allocation7 + $0x1e8] sm:$0xff]
    %v208 = vld [vmem:[#allocation7 + $0x1f0] sm:$0xff]
    %v209 = vld [vmem:[#allocation7 + $0x1f8] sm:$0xff]
    %v210 = vsub.f32 %v82, %v146
    %v211 = vsub.f32 %v83, %v147
    %v212 = vsub.f32 %v84, %v148
    %v213 = vsub.f32 %v85, %v149
    %v214 = vsub.f32 %v86, %v150
    %v215 = vsub.f32 %v87, %v151
    %v216 = vsub.f32 %v88, %v152
    %v217 = vsub.f32 %v89, %v153
    %v218 = vsub.f32 %v90, %v154
    %v219 = vsub.f32 %v91, %v155
    %v220 = vsub.f32 %v92, %v156
    %v221 = vsub.f32 %v93, %v157
    %v222 = vsub.f32 %v94, %v158
    %v223 = vsub.f32 %v95, %v159
    %v224 = vsub.f32 %v96, %v160
    %v225 = vsub.f32 %v97, %v161
    %v226 = vsub.f32 %v98, %v162
    %v227 = vsub.f32 %v99, %v163
    %v228 = vsub.f32 %v100, %v164
    %v229 = vsub.f32 %v101, %v165
    %v230 = vsub.f32 %v102, %v166
    %v231 = vsub.f32 %v103, %v167
    %v232 = vsub.f32 %v104, %v168
    %v233 = vsub.f32 %v105, %v169
    %v234 = vsub.f32 %v106, %v170
    %v235 = vsub.f32 %v107, %v171
    %v236 = vsub.f32 %v108, %v172
    %v237 = vsub.f32 %v109, %v173
    %v238 = vsub.f32 %v110, %v174
    %v239 = vsub.f32 %v111, %v175
    %v240 = vsub.f32 %v112, %v176
    %v241 = vsub.f32 %v113, %v177
    %v242 = vsub.f32 %v114, %v178
    %v243 = vsub.f32 %v115, %v179
    %v244 = vsub.f32 %v116, %v180
    %v245 = vsub.f32 %v117, %v181
    %v246 = vsub.f32 %v118, %v182
    %v247 = vsub.f32 %v119, %v183
    %v248 = vsub.f32 %v120, %v184
    %v249 = vsub.f32 %v121, %v185
    %v250 = vsub.f32 %v122, %v186
    %v251 = vsub.f32 %v123, %v187
    %v252 = vsub.f32 %v124, %v188
    %v253 = vsub.f32 %v125, %v189
    %v254 = vsub.f32 %v126, %v190
    %v255 = vsub.f32 %v127, %v191
    %v256 = vsub.f32 %v128, %v192
    %v257 = vsub.f32 %v129, %v193
    %v258 = vsub.f32 %v130, %v194
    %v259 = vsub.f32 %v131, %v195
    %v260 = vsub.f32 %v132, %v196
    %v261 = vsub.f32 %v133, %v197
    %v262 = vsub.f32 %v134, %v198
    %v263 = vsub.f32 %v135, %v199
    %v264 = vsub.f32 %v136, %v200
    %v265 = vsub.f32 %v137, %v201
    %v266 = vsub.f32 %v138, %v202
    %v267 = vsub.f32 %v139, %v203
    %v268 = vsub.f32 %v140, %v204
    %v269 = vsub.f32 %v141, %v205
    %v270 = vsub.f32 %v142, %v206
    %v271 = vsub.f32 %v143, %v207
    %v272 = vsub.f32 %v144, %v208
    %v273 = vsub.f32 %v145, %v209
    %v274 = vld [vmem:[#allocation8] sm:$0x3]
    %v275 = vld [vmem:[%s4] sm:$0x3]
    %v276 = vsub.f32 %v274, %v275
    %v277 = vld [vmem:[#allocation2] sm:$0xff]
    %v278 = vld [vmem:[#allocation2 + $0x8] sm:$0xff]
    %v279 = vld [vmem:[#allocation2 + $0x10] sm:$0xff]
    %v280 = vld [vmem:[#allocation2 + $0x18] sm:$0xff]
    %v282 = vperm.slane %v276, 0
    %v283 = vperm.slane %v276, 1
    %286 = vmatpush.msra.mxu0 %v240
    %287 = vmatpush.msra.mxu0 %v238
    %288 = vmatpush.msra.mxu0 %v236
    %289 = vmatpush.msra.mxu0 %v234
    %290 = vmatpush.msra.mxu0 %v232
    %291 = vmatpush.msra.mxu0 %v230
    %292 = vmatpush.msra.mxu0 %v228
    %293 = vmatpush.msra.mxu0 %v226
    %294 = vmatpush.msra.mxu0 %v224
    %295 = vmatpush.msra.mxu0 %v222
    %296 = vmatpush.msra.mxu0 %v220
    %297 = vmatpush.msra.mxu0 %v218
    %298 = vmatpush.msra.mxu0 %v216
    %299 = vmatpush.msra.mxu0 %v214
    %300 = vmatpush.msra.mxu0 %v212
    %301 = vmatpush.msra.mxu0 %v210
    %302 = vmatmul.f32.gmra.mxu0 %v277
    %v303 = vpop.f32.mrf.mxu0
    %v304 = vadd.f32 %v282, %v303
    %305 = vmatmul.f32.gmra.mxu0 %v279
    %v306 = vpop.f32.mrf.mxu0
    %v307 = vadd.f32 %v282, %v306
    %308 = vdwg.mxu0
    %309 = vmatpush.msra.mxu0 %v272
    %310 = vmatpush.msra.mxu0 %v270
    %311 = vmatpush.msra.mxu0 %v268
    %312 = vmatpush.msra.mxu0 %v266
    %313 = vmatpush.msra.mxu0 %v264
    %314 = vmatpush.msra.mxu0 %v262
    %315 = vmatpush.msra.mxu0 %v260
    %316 = vmatpush.msra.mxu0 %v258
    %317 = vmatpush.msra.mxu0 %v256
    %318 = vmatpush.msra.mxu0 %v254
    %319 = vmatpush.msra.mxu0 %v252
    %320 = vmatpush.msra.mxu0 %v250
    %321 = vmatpush.msra.mxu0 %v248
    %322 = vmatpush.msra.mxu0 %v246
    %323 = vmatpush.msra.mxu0 %v244
    %324 = vmatpush.msra.mxu0 %v242
    %325 = vmatmul.f32.gmra.mxu0 %v278
    %v326 = vpop.f32.mrf.mxu0
    %v327 = vadd.f32 %v304, %v326
    %328 = vmatmul.f32.gmra.mxu0 %v280
    %v329 = vpop.f32.mrf.mxu0
    %v330 = vadd.f32 %v307, %v329
    %331 = vdwg.mxu0
    %332 = vmatpush.msra.mxu0 %v241
    %333 = vmatpush.msra.mxu0 %v239
    %334 = vmatpush.msra.mxu0 %v237
    %335 = vmatpush.msra.mxu0 %v235
    %336 = vmatpush.msra.mxu0 %v233
    %337 = vmatpush.msra.mxu0 %v231
    %338 = vmatpush.msra.mxu0 %v229
    %339 = vmatpush.msra.mxu0 %v227
    %340 = vmatpush.msra.mxu0 %v225
    %341 = vmatpush.msra.mxu0 %v223
    %342 = vmatpush.msra.mxu0 %v221
    %343 = vmatpush.msra.mxu0 %v219
    %344 = vmatpush.msra.mxu0 %v217
    %345 = vmatpush.msra.mxu0 %v215
    %346 = vmatpush.msra.mxu0 %v213
    %347 = vmatpush.msra.mxu0 %v211
    %348 = vmatmul.f32.gmra.mxu0 %v277
    %v349 = vpop.f32.mrf.mxu0
    %v350 = vadd.f32 %v283, %v349
    %351 = vmatmul.f32.gmra.mxu0 %v279
    %v352 = vpop.f32.mrf.mxu0
    %v353 = vadd.f32 %v283, %v352
    %354 = vdwg.mxu0
    %355 = vmatpush.msra.mxu0 %v273
    %356 = vmatpush.msra.mxu0 %v271
    %357 = vmatpush.msra.mxu0 %v269
    %358 = vmatpush.msra.mxu0 %v267
    %359 = vmatpush.msra.mxu0 %v265
    %360 = vmatpush.msra.mxu0 %v263
    %361 = vmatpush.msra.mxu0 %v261
    %362 = vmatpush.msra.mxu0 %v259
    %363 = vmatpush.msra.mxu0 %v257
    %364 = vmatpush.msra.mxu0 %v255
    %365 = vmatpush.msra.mxu0 %v253
    %366 = vmatpush.msra.mxu0 %v251
    %367 = vmatpush.msra.mxu0 %v249
    %368 = vmatpush.msra.mxu0 %v247
    %369 = vmatpush.msra.mxu0 %v245
    %370 = vmatpush.msra.mxu0 %v243
    %371 = vmatmul.f32.gmra.mxu0 %v278
    %v372 = vpop.f32.mrf.mxu0
    %v373 = vadd.f32 %v350, %v372
    %374 = vmatmul.f32.gmra.mxu0 %v280
    %v375 = vpop.f32.mrf.mxu0
    %v376 = vadd.f32 %v353, %v375
    %377 = vdwg.mxu0
    %378 = vst [vmem:[#allocation10] sm:$0xff] %v327
    %379 = vst [vmem:[#allocation10 + $0x8] sm:$0xff] %v373
    %380 = vst [vmem:[#allocation10 + $0x10] sm:$0xff] %v330
    %381 = vst [vmem:[#allocation10 + $0x18] sm:$0xff] %v376
    // Predicated region
    $region38: #{zero_output.1} parent=1 // pred_check
      _
    $region39: #{zero_output.1} parent=1 // pred_check_branch
      %383 = sbr.rel (0) target = $region41
    $region40: #{zero_output.1} parent=1 // pred_region
      %385 = vsyncadd [#allocation4], 0
      %s386 = sshll.u32 [#allocation10], 4
      %s387 = int_to_ptr.vmem [resolvable:$true] %s386
      %s388 = sshll.u32 %s5, 4
      %s389 = int_to_ptr.hbm [resolvable:$true] %s388
      %394 = dma.vmem_to_hbm [thread:$0]  %s387, 512, %s389, [#allocation4], 256, 256, 16
    $region41: #{zero_output.1} parent=1 // pred_fallthru
      _
    // Predicated region
    $region42: #{zero_output.1} parent=1 // pred_check
      _
    $region43: #{zero_output.1} parent=1 // pred_check_branch
      %396 = sbr.rel (0) target = $region45
    $region44: #{zero_output.1} parent=1 // pred_region
      %398 = dma.done [#allocation4], 512
    $region45: #{zero_output.1} parent=1 // pred_fallthru
      _
    %399 = vsyncpa [#allocation3], 1
    %400 = vsyncpa [#allocation6], 1
    %401 = vsyncpa [#allocation9], 1
    %402 = vsyncpa [#allocation4], 1

</llo_original>
